<compile_context>
chip_gen: v5e
topology: v5e:2x2
jax: 0.10.0
libtpu: 0.0.40
codegen_flags: <defaults>
</compile_context>

<pallas_src>
import functools

import jax
import jax.numpy as jnp
from jax import lax
from jax.experimental import pallas as pl
from jax.experimental.pallas import tpu as pltpu


def _gat_kernel(x_ref, idx_j_ref, theta_t_ref, att_i_ref, att_j_ref, bias_ref,
                o_ref, *, negative_slope, batch_block):
    k_nbr = idx_j_ref.shape[1]
    n = idx_j_ref.shape[2]

    # Hoisted parameter loads (shared across the batch block).
    theta_t = theta_t_ref[...]                               # (C_out, C_in)
    att_i = att_i_ref[...]                                   # (1, C_out)
    att_j = att_j_ref[...]                                   # (C_out, 1)
    bias = bias_ref[...]                                     # (C_out, 1)
    iota_m = lax.broadcasted_iota(jnp.int32, (n, 1), 0)      # sublane id == m

    def per_batch(bi):
        # BasicConv([C_in, C_out], 'relu', norm=None, bias=False) == relu(Theta x).
        x_cn = x_ref[bi].astype(jnp.float32)                 # (C_in, N)
        h_cn = jnp.maximum(
            jnp.dot(theta_t, x_cn, preferred_element_type=jnp.float32), 0.0)

        # e_i[n] = <att_i, h[:, n]> as a lane row; e_j[m] = <att_j, h[:, m]>
        # as a sublane column (so the outer-add needs no relayout).
        e_i = jnp.dot(att_i, h_cn, preferred_element_type=jnp.float32)      # (1, N)
        e_j = lax.dot_general(h_cn, att_j, (((0,), (0,)), ((), ())),
                              preferred_element_type=jnp.float32)           # (N, 1)

        # Edge-multiplicity matrix, transposed: AT[m, n] = #{k : idx_j[n,k] == m}.
        # Built with K (N, N) compare+adds; only O(N^2) ever live.
        idx_j = idx_j_ref[bi]                                 # (K, N) int32
        a_t = jnp.zeros((n, n), jnp.float32)
        for kk in range(k_nbr):                               # static, small K
            a_t = a_t + (iota_m == idx_j[kk:kk + 1, :]).astype(jnp.float32)

        # s[m, n] = e_j[m] + e_i[n]; LeakyReLU; mask non-edges with -inf;
        # multiplicity-weighted column softmax == per-edge softmax over K.
        s_t = e_j + e_i                                       # (N, N)
        s_t = jnp.where(s_t >= 0, s_t, negative_slope * s_t)
        s_t = jnp.where(a_t > 0.0, s_t, -jnp.inf)
        col_max = jnp.max(s_t, axis=0, keepdims=True)         # (1, N), finite
        w_att = a_t * jnp.exp(s_t - col_max)                  # exp(-inf) -> 0
        denom = jnp.sum(w_att, axis=0, keepdims=True)         # (1, N), >= 1
        # NOTE: approx EUP reciprocal -> softmax rows sum to 1 only to ~2^-12.
        agg_t = w_att * pl.reciprocal(denom, approx=True)     # (N, N), [m, n]
        # TODO(synk): attention dropout omitted (module default p=0 / eval mode).

        # out[c, n] = sum_m h[c, m] * agg_t[m, n] -> single MXU matmul,
        # lane-dense output (C_out on sublanes, N on lanes) -> unmasked vst.
        out_cn = jnp.dot(h_cn, agg_t, preferred_element_type=jnp.float32)
        o_ref[bi] = (out_cn + bias).astype(o_ref.dtype)

    if batch_block == 1:
        per_batch(0)
    else:
        def body(bi, carry):
            per_batch(bi)
            return carry
        lax.fori_loop(0, batch_block, body, 0, unroll=True)


def add_self_loops(edge_index):
    """edge_index: (2, B, N, K) int; append every node as its own neighbor."""
    _, b, n, _ = edge_index.shape
    self_idx = jnp.broadcast_to(
        jnp.arange(n, dtype=edge_index.dtype)[None, None, :, None], (2, b, n, 1))
    return jnp.concatenate([edge_index, self_idx], axis=-1)


def gat_conv2d(x_nchw, edge_index, params, negative_slope=0.2, batch_block=None):
    """Pallas implementation of GATConv2d.forward (x: NCHW (B, C_in, N, 1))."""
    b, c_in, n, _ = x_nchw.shape
    x = x_nchw[..., 0]                                       # (B, C_in, N), native dtype

    # The dense reformulation assumes edge_index[1] (the center / "i" index)
    # is arange(N), which is how this module is always driven (dense kNN
    # graphs); edge_index[1] is therefore not consumed by the kernel.
    # TODO(synk): support arbitrary center indices (needs a per-edge score path).
    ei = add_self_loops(edge_index)
    idx_j = jnp.transpose(ei[0], (0, 2, 1)).astype(jnp.int32)  # (B, K+1, N) lane-dense
    k = idx_j.shape[1]

    w = params["w"].astype(jnp.float32)                       # (C_in, C_out)
    c_out = w.shape[1]
    theta_t = jnp.transpose(w)                                 # (C_out, C_in), tiny
    att = params["att"].reshape(2 * c_out).astype(jnp.float32)
    att_i = att[:c_out].reshape(1, c_out)                      # row projection
    att_j = att[c_out:].reshape(c_out, 1)                      # column projection
    bias = params["bias"].reshape(c_out, 1).astype(jnp.float32)

    if batch_block is None:
        batch_block = 1
        # Amortize per-grid-step overhead at small N while keeping >= 2 grid
        # steps so megacore / both v7x TensorCores stay busy.
        if n <= 128 and b >= 4:
            for cand in (4, 2):
                if b % cand == 0:
                    batch_block = cand
                    break
    if b % batch_block != 0:
        batch_block = 1

    # VMEM budget: dense (N, N) working set + double-buffered IO blocks.
    work_bytes = 6 * n * n * 4 + 4 * (c_in + 3 * c_out) * n * 4
    io_bytes = 2 * batch_block * ((c_in + c_out) * n * 4 + k * n * 4)
    vmem_limit = int(min(64 * 1024 * 1024,
                         max(32 * 1024 * 1024, 2 * (work_bytes + io_bytes))))

    kernel = functools.partial(_gat_kernel, negative_slope=negative_slope,
                               batch_block=batch_block)
    out = pl.pallas_call(
        kernel,
        out_shape=jax.ShapeDtypeStruct((b, c_out, n), x_nchw.dtype),
        grid=(b // batch_block,),
        in_specs=[
            pl.BlockSpec((batch_block, c_in, n), lambda i: (i, 0, 0)),  # x, channels-first
            pl.BlockSpec((batch_block, k, n), lambda i: (i, 0, 0)),     # idx_j (K, N)
            pl.BlockSpec((c_out, c_in), lambda i: (0, 0)),              # Theta^T
            pl.BlockSpec((1, c_out), lambda i: (0, 0)),                 # att_i row
            pl.BlockSpec((c_out, 1), lambda i: (0, 0)),                 # att_j column
            pl.BlockSpec((c_out, 1), lambda i: (0, 0)),                 # bias column
        ],
        out_specs=pl.BlockSpec((batch_block, c_out, n), lambda i: (i, 0, 0)),
        # Batch axis is "parallel" -> megacore / both v7x TensorCores for B > 1.
        # TODO(synk): for B == 1 on v7x, add a second parallel axis over
        # N-column chunks of the output so both TensorCores get work.
        compiler_params=pltpu.CompilerParams(
            dimension_semantics=("parallel",),
            vmem_limit_bytes=vmem_limit),
    )(x, idx_j, theta_t, att_i, att_j, bias)

    # Already NCHW channels-first: just restore the trailing singleton width.
    return out[..., None]                                     # (B, C_out, N, 1)


def gat_conv2d_reference(x_nchw, edge_index, params, negative_slope=0.2):
    """Pure-JAX reference mirroring the PyTorch forward exactly."""
    x = jnp.transpose(x_nchw[..., 0], (0, 2, 1)).astype(jnp.float32)   # (B, N, C_in)
    ei = add_self_loops(edge_index)
    idx_j, idx_i = ei[0], ei[1]
    w = params["w"]
    c_out = w.shape[1]
    att = params["att"].reshape(2 * c_out)
    att_i, att_j = att[:c_out], att[c_out:]
    bias = params["bias"].reshape(c_out)

    h = jax.nn.relu(jnp.einsum("bnc,cd->bnd", x, w))                   # (B, N, C_out)
    gather = jax.vmap(lambda hb, ib: hb[ib])                           # -> (B, N, K, C)
    x_i = gather(h, idx_i)
    x_j = gather(h, idx_j)
    alpha = (x_i * att_i).sum(-1) + (x_j * att_j).sum(-1)              # (B, N, K)
    alpha = jnp.where(alpha >= 0, alpha, negative_slope * alpha)
    alpha = jax.nn.softmax(alpha, axis=-1)
    out = (x_j * alpha[..., None]).sum(2) + bias                       # (B, N, C_out)
    return jnp.transpose(out, (0, 2, 1))[..., None]


if __name__ == "__main__":
    B, C_IN, C_OUT, N, K = 2, 4, 8, 16, 4

    key = jax.random.PRNGKey(0)
    kx, kw, ka, kidx = jax.random.split(key, 4)

    # Inputs: x in NCHW (B, C_in, N, 1); dense kNN-style edge_index (2, B, N, K)
    # with row 0 = neighbor indices, row 1 = center indices.
    x = jax.random.normal(kx, (B, C_IN, N, 1), dtype=jnp.float32)
    nn_idx = jax.random.randint(kidx, (B, N, K), 0, N, dtype=jnp.int32)
    center_idx = jnp.broadcast_to(
        jnp.arange(N, dtype=jnp.int32)[None, :, None], (B, N, K))
    edge_index = jnp.stack([nn_idx, center_idx], axis=0)

    # Deterministic parameter init (shapes from GATConv2d.__init__):
    #   nn: Conv2d(C_in, C_out, 1, bias=False)  -> weight used as (C_in, C_out)
    #   att: (1, 2*C_out, 1, 1) glorot          -> stored flat (2*C_out,)
    #   bias: (1, C_out, 1, 1) zeros            -> stored flat (C_out,)
    w_bound = (6.0 / (C_IN + C_OUT)) ** 0.5
    w = jax.random.uniform(kw, (C_IN, C_OUT), jnp.float32, -w_bound, w_bound)
    a_bound = (6.0 / (2 * C_OUT)) ** 0.5
    att = jax.random.uniform(ka, (2 * C_OUT,), jnp.float32, -a_bound, a_bound)
    bias = jnp.zeros((C_OUT,), jnp.float32)
    params = {"w": w, "att": att, "bias": bias}

    ref = jax.block_until_ready(gat_conv2d_reference(x, edge_index, params))

    # Default path (batch_block=1, grid over B) and batch-blocked path.
    out1 = jax.block_until_ready(gat_conv2d(x, edge_index, params))
    out2 = jax.block_until_ready(gat_conv2d(x, edge_index, params, batch_block=2))

    assert out1.shape == (B, C_OUT, N, 1), out1.shape
    assert out2.shape == (B, C_OUT, N, 1), out2.shape
    # Tolerance loosened slightly vs f32 exact because the softmax uses the
    # approximate EUP reciprocal (pl.reciprocal(approx=True)).
    assert jnp.allclose(out1, ref, rtol=5e-3, atol=5e-3), float(
        jnp.max(jnp.abs(out1 - ref)))
    assert jnp.allclose(out2, ref, rtol=5e-3, atol=5e-3), float(
        jnp.max(jnp.abs(out2 - ref)))
    print("KERNEL_OK")
</pallas_src>

<mosaic_0001>
module attributes {stable_mosaic.version = 11 : i64} {
  func.func @_gat_kernel(%arg0: i32, %arg1: memref<1x4x16xf32, #tpu.memory_space<vmem>>, %arg2: memref<1x5x16xi32, #tpu.memory_space<vmem>>, %arg3: memref<8x4xf32, #tpu.memory_space<vmem>>, %arg4: memref<1x8xf32, #tpu.memory_space<vmem>>, %arg5: memref<8x1xf32, #tpu.memory_space<vmem>>, %arg6: memref<8x1xf32, #tpu.memory_space<vmem>>, %arg7: memref<1x8x16xf32, #tpu.memory_space<vmem>>) attributes {dimension_semantics = [#tpu.dimension_semantics<parallel>], iteration_bounds = array<i64: 2>, scalar_prefetch = 0 : i64, scratch_operands = 0 : i64, tpu.core_type = #tpu.core_type<tc>, window_params = [{transform_indices = @transform_0, window_bounds = array<i64: 1, 4, 16>}, {transform_indices = @transform_1, window_bounds = array<i64: 1, 5, 16>}, {pipeline_mode = #tpu.pipeline_mode<synchronous>, transform_indices = @transform_2, window_bounds = array<i64: 8, 4>}, {pipeline_mode = #tpu.pipeline_mode<synchronous>, transform_indices = @transform_3, window_bounds = array<i64: 1, 8>}, {pipeline_mode = #tpu.pipeline_mode<synchronous>, transform_indices = @transform_4, window_bounds = array<i64: 8, 1>}, {pipeline_mode = #tpu.pipeline_mode<synchronous>, transform_indices = @transform_5, window_bounds = array<i64: 8, 1>}, {transform_indices = @transform_6, window_bounds = array<i64: 1, 8, 16>}]} {
    %c0 = arith.constant 0 : index
    %c0_0 = arith.constant 0 : index
    %0 = vector.load %arg3[%c0, %c0_0] : memref<8x4xf32, #tpu.memory_space<vmem>>, vector<8x4xf32>
    %c0_1 = arith.constant 0 : index
    %c0_2 = arith.constant 0 : index
    %1 = vector.load %arg4[%c0_1, %c0_2] : memref<1x8xf32, #tpu.memory_space<vmem>>, vector<1x8xf32>
    %c0_3 = arith.constant 0 : index
    %c0_4 = arith.constant 0 : index
    %2 = vector.load %arg5[%c0_3, %c0_4] : memref<8x1xf32, #tpu.memory_space<vmem>>, vector<8x1xf32>
    %c0_5 = arith.constant 0 : index
    %c0_6 = arith.constant 0 : index
    %3 = vector.load %arg6[%c0_5, %c0_6] : memref<8x1xf32, #tpu.memory_space<vmem>>, vector<8x1xf32>
    %4 = tpu.iota {dimensions = array<i32: 0>} : vector<16x1xi32>
    %c0_7 = arith.constant 0 : index
    %c0_8 = arith.constant 0 : index
    %c0_9 = arith.constant 0 : index
    %5 = vector.load %arg1[%c0_7, %c0_8, %c0_9] : memref<1x4x16xf32, #tpu.memory_space<vmem>>, vector<1x4x16xf32>
    %6 = vector.shape_cast %5 : vector<1x4x16xf32> to vector<4x16xf32>
    %cst = arith.constant dense<0.000000e+00> : vector<8x16xf32>
    %7 = tpu.matmul %0, %6, %cst {dimension_numbers = #tpu.dot_dimension_numbers<[1], [0], [0], [1], [0, 0, 1, 1], [], []>} : vector<8x4xf32>, vector<4x16xf32>, vector<8x16xf32> -> vector<8x16xf32>
    %cst_10 = arith.constant 0.000000e+00 : f32
    %8 = vector.broadcast %cst_10 : f32 to vector<8x16xf32>
    %9 = arith.maximumf %7, %8 : vector<8x16xf32>
    %cst_11 = arith.constant dense<0.000000e+00> : vector<1x16xf32>
    %10 = tpu.matmul %1, %9, %cst_11 {dimension_numbers = #tpu.dot_dimension_numbers<[1], [0], [0], [1], [0, 0, 1, 1], [], []>} : vector<1x8xf32>, vector<8x16xf32>, vector<1x16xf32> -> vector<1x16xf32>
    %cst_12 = arith.constant dense<0.000000e+00> : vector<16x1xf32>
    %11 = tpu.matmul %9, %2, %cst_12 {dimension_numbers = #tpu.dot_dimension_numbers<[0], [0], [1], [1], [0, 1, 1, 1], [], []>} : vector<8x16xf32>, vector<8x1xf32>, vector<16x1xf32> -> vector<16x1xf32>
    %c0_13 = arith.constant 0 : index
    %c0_14 = arith.constant 0 : index
    %c0_15 = arith.constant 0 : index
    %12 = vector.load %arg2[%c0_13, %c0_14, %c0_15] : memref<1x5x16xi32, #tpu.memory_space<vmem>>, vector<1x5x16xi32>
    %13 = vector.shape_cast %12 : vector<1x5x16xi32> to vector<5x16xi32>
    %cst_16 = arith.constant 0.000000e+00 : f32
    %14 = vector.broadcast %cst_16 : f32 to vector<16x16xf32>
    %15 = vector.extract_strided_slice %13 {offsets = [0, 0], sizes = [1, 16], strides = [1, 1]} : vector<5x16xi32> to vector<1x16xi32>
    %16 = vector.broadcast %4 : vector<16x1xi32> to vector<16x16xi32>
    %17 = vector.broadcast %15 : vector<1x16xi32> to vector<16x16xi32>
    %18 = arith.cmpi eq, %16, %17 : vector<16x16xi32>
    %19 = arith.extui %18 : vector<16x16xi1> to vector<16x16xi32>
    %20 = arith.sitofp %19 : vector<16x16xi32> to vector<16x16xf32>
    %21 = arith.addf %14, %20 : vector<16x16xf32>
    %22 = vector.extract_strided_slice %13 {offsets = [1, 0], sizes = [1, 16], strides = [1, 1]} : vector<5x16xi32> to vector<1x16xi32>
    %23 = vector.broadcast %4 : vector<16x1xi32> to vector<16x16xi32>
    %24 = vector.broadcast %22 : vector<1x16xi32> to vector<16x16xi32>
    %25 = arith.cmpi eq, %23, %24 : vector<16x16xi32>
    %26 = arith.extui %25 : vector<16x16xi1> to vector<16x16xi32>
    %27 = arith.sitofp %26 : vector<16x16xi32> to vector<16x16xf32>
    %28 = arith.addf %21, %27 : vector<16x16xf32>
    %29 = vector.extract_strided_slice %13 {offsets = [2, 0], sizes = [1, 16], strides = [1, 1]} : vector<5x16xi32> to vector<1x16xi32>
    %30 = vector.broadcast %4 : vector<16x1xi32> to vector<16x16xi32>
    %31 = vector.broadcast %29 : vector<1x16xi32> to vector<16x16xi32>
    %32 = arith.cmpi eq, %30, %31 : vector<16x16xi32>
    %33 = arith.extui %32 : vector<16x16xi1> to vector<16x16xi32>
    %34 = arith.sitofp %33 : vector<16x16xi32> to vector<16x16xf32>
    %35 = arith.addf %28, %34 : vector<16x16xf32>
    %36 = vector.extract_strided_slice %13 {offsets = [3, 0], sizes = [1, 16], strides = [1, 1]} : vector<5x16xi32> to vector<1x16xi32>
    %37 = vector.broadcast %4 : vector<16x1xi32> to vector<16x16xi32>
    %38 = vector.broadcast %36 : vector<1x16xi32> to vector<16x16xi32>
    %39 = arith.cmpi eq, %37, %38 : vector<16x16xi32>
    %40 = arith.extui %39 : vector<16x16xi1> to vector<16x16xi32>
    %41 = arith.sitofp %40 : vector<16x16xi32> to vector<16x16xf32>
    %42 = arith.addf %35, %41 : vector<16x16xf32>
    %43 = vector.extract_strided_slice %13 {offsets = [4, 0], sizes = [1, 16], strides = [1, 1]} : vector<5x16xi32> to vector<1x16xi32>
    %44 = vector.broadcast %4 : vector<16x1xi32> to vector<16x16xi32>
    %45 = vector.broadcast %43 : vector<1x16xi32> to vector<16x16xi32>
    %46 = arith.cmpi eq, %44, %45 : vector<16x16xi32>
    %47 = arith.extui %46 : vector<16x16xi1> to vector<16x16xi32>
    %48 = arith.sitofp %47 : vector<16x16xi32> to vector<16x16xf32>
    %49 = arith.addf %42, %48 : vector<16x16xf32>
    %50 = vector.broadcast %11 : vector<16x1xf32> to vector<16x16xf32>
    %51 = vector.broadcast %10 : vector<1x16xf32> to vector<16x16xf32>
    %52 = arith.addf %50, %51 : vector<16x16xf32>
    %cst_17 = arith.constant 0.000000e+00 : f32
    %53 = vector.broadcast %cst_17 : f32 to vector<16x16xf32>
    %54 = arith.cmpf oge, %52, %53 : vector<16x16xf32>
    %cst_18 = arith.constant 2.000000e-01 : f32
    %55 = vector.broadcast %cst_18 : f32 to vector<16x16xf32>
    %56 = arith.mulf %55, %52 : vector<16x16xf32>
    %57 = arith.select %54, %52, %56 : vector<16x16xi1>, vector<16x16xf32>
    %cst_19 = arith.constant 0.000000e+00 : f32
    %58 = vector.broadcast %cst_19 : f32 to vector<16x16xf32>
    %59 = arith.cmpf ogt, %49, %58 : vector<16x16xf32>
    %cst_20 = arith.constant 0xFF800000 : f32
    %60 = vector.broadcast %cst_20 : f32 to vector<16x16xf32>
    %61 = arith.select %59, %57, %60 : vector<16x16xi1>, vector<16x16xf32>
    %cst_21 = arith.constant dense<0xFF800000> : vector<16xf32>
    %62 = vector.multi_reduction <maximumf>, %61, %cst_21 [0] : vector<16x16xf32> to vector<16xf32>
    %63 = vector.shape_cast %62 : vector<16xf32> to vector<1x16xf32>
    %64 = vector.broadcast %63 : vector<1x16xf32> to vector<16x16xf32>
    %65 = arith.subf %61, %64 : vector<16x16xf32>
    %66 = math.exp %65 : vector<16x16xf32>
    %67 = arith.mulf %49, %66 : vector<16x16xf32>
    %cst_22 = arith.constant dense<0.000000e+00> : vector<16xf32>
    %68 = vector.multi_reduction <add>, %67, %cst_22 [0] : vector<16x16xf32> to vector<16xf32>
    %69 = vector.shape_cast %68 : vector<16xf32> to vector<1x16xf32>
    %70 = tpu.reciprocal %69 {approx = true} : vector<1x16xf32> -> vector<1x16xf32>
    %71 = vector.broadcast %70 : vector<1x16xf32> to vector<16x16xf32>
    %72 = arith.mulf %67, %71 : vector<16x16xf32>
    %cst_23 = arith.constant dense<0.000000e+00> : vector<8x16xf32>
    %73 = tpu.matmul %9, %72, %cst_23 {dimension_numbers = #tpu.dot_dimension_numbers<[1], [0], [0], [1], [0, 0, 1, 1], [], []>} : vector<8x16xf32>, vector<16x16xf32>, vector<8x16xf32> -> vector<8x16xf32>
    %74 = vector.broadcast %3 : vector<8x1xf32> to vector<8x16xf32>
    %75 = arith.addf %73, %74 : vector<8x16xf32>
    %c0_24 = arith.constant 0 : index
    %c0_25 = arith.constant 0 : index
    %c0_26 = arith.constant 0 : index
    %76 = vector.load %arg7[%c0_24, %c0_25, %c0_26] : memref<1x8x16xf32, #tpu.memory_space<vmem>>, vector<1x8x16xf32>
    %77 = vector.shape_cast %76 : vector<1x8x16xf32> to vector<8x16xf32>
    %78 = vector.shape_cast %75 : vector<8x16xf32> to vector<1x8x16xf32>
    tpu.vector_store %arg7[%c0_24, %c0_25, %c0_26], %78 {strides = array<i32>} : memref<1x8x16xf32, #tpu.memory_space<vmem>>, vector<1x8x16xf32>,
    return
  }
  func.func @transform_0(%arg0: i32) -> (i32, i32, i32) {
    %c0_i32 = arith.constant 0 : i32
    %c0_i32_0 = arith.constant 0 : i32
    %c0_i32_1 = arith.constant 0 : i32
    return %arg0, %c0_i32, %c0_i32_0 : i32, i32, i32
  }
  func.func @transform_1(%arg0: i32) -> (i32, i32, i32) {
    %c0_i32 = arith.constant 0 : i32
    %c0_i32_0 = arith.constant 0 : i32
    %c0_i32_1 = arith.constant 0 : i32
    return %arg0, %c0_i32, %c0_i32_0 : i32, i32, i32
  }
  func.func @transform_2(%arg0: i32) -> (i32, i32) {
    %c0_i32 = arith.constant 0 : i32
    %c0_i32_0 = arith.constant 0 : i32
    %c0_i32_1 = arith.constant 0 : i32
    return %c0_i32, %c0_i32_0 : i32, i32
  }
  func.func @transform_3(%arg0: i32) -> (i32, i32) {
    %c0_i32 = arith.constant 0 : i32
    %c0_i32_0 = arith.constant 0 : i32
    %c0_i32_1 = arith.constant 0 : i32
    return %c0_i32, %c0_i32_0 : i32, i32
  }
  func.func @transform_4(%arg0: i32) -> (i32, i32) {
    %c0_i32 = arith.constant 0 : i32
    %c0_i32_0 = arith.constant 0 : i32
    %c0_i32_1 = arith.constant 0 : i32
    return %c0_i32, %c0_i32_0 : i32, i32
  }
  func.func @transform_5(%arg0: i32) -> (i32, i32) {
    %c0_i32 = arith.constant 0 : i32
    %c0_i32_0 = arith.constant 0 : i32
    %c0_i32_1 = arith.constant 0 : i32
    return %c0_i32, %c0_i32_0 : i32, i32
  }
  func.func @transform_6(%arg0: i32) -> (i32, i32, i32) {
    %c0_i32 = arith.constant 0 : i32
    %c0_i32_0 = arith.constant 0 : i32
    %c0_i32_1 = arith.constant 0 : i32
    return %arg0, %c0_i32, %c0_i32_0 : i32, i32, i32
  }
}

</mosaic_0001>

<llo_original>
// kernel: tpu_custom_call.1
$region0: #{tpu_custom_call.1}
  #allocation0 [shape = 'u32[]', space=smem, size = 0x4, offset = 0x4, fixed_abs, tag = 'smem constant byte address 0x4 - core index']
  #allocation1 [shape = 'u32[72,128]{1,0:T(1,128)}', space=vmem, size = 0x9000, scoped, tag = 'internal scratch']
  %s0 = inlined_call_operand.vmem [shape: f32[2,4,16], index: 0, kind: input, shape index: {}]
  %s1 = inlined_call_operand.vmem [shape: s32[2,5,16], index: 1, kind: input, shape index: {}]
  %s2 = inlined_call_operand.vmem [shape: f32[8,4], index: 2, kind: input, shape index: {}]
  %s3 = inlined_call_operand.vmem [shape: f32[1,8], index: 3, kind: input, shape index: {}]
  %s4 = inlined_call_operand.vmem [shape: f32[8,1], index: 4, kind: input, shape index: {}]
  %s5 = inlined_call_operand.vmem [shape: f32[8,1], index: 5, kind: input, shape index: {}]
  %s6 = inlined_call_operand.hbm [shape: f32[2,8,16], index: 6, kind: output, shape index: {}]
  %s7 = sld [smem:[#allocation0]]
  $region57: #{tpu_custom_call.1} parent=0
    _
  %s9 = ssub.s32 1, %s7
  %s10 = scalar_select 0, %s9, %s7
  $region1: #{tpu_custom_call.1} parent=0
    #allocation2 [shape = 'u8[8192]{0}', space=vmem, size = 0x2000, scoped, tag = 'output window, operand 0']
    #allocation3 [shape = 's32[2]{0}', space=sflag, size = 0x8, scoped, tag = 'scoped memory for tpu_custom_call.1']
    %11 = vsyncpa [#allocation3], 0
    %s12 = scalar_lea.sflag [#allocation3], 1
    %13 = vsyncpa %s12, 0
    loop: start=0, step=1, limit=4
    $region2: #{tpu_custom_call.1} parent=1 // loop_pre_header
      _
    $region3: #{tpu_custom_call.1} parent=1 // loop_header
      %s15 = sphi 0, %s19
      %p16 = scmp.ge.s32.totalorder %s15, 4
      %s25 = sphi 0, %s27
      %s28 = sphi 0, %s25
      %s29 = sphi 0, %s28
      %s45 = sphi 0, %s29
      %s51 = sphi 0, %s53
      %s54 = sphi 0, %s51
      %s55 = sphi 0, %s54
      %s71 = sphi 0, %s55
      %s75 = sphi 0, %s75
      %s77 = sphi 0, %s75
      %s78 = sphi 0, %s77
      %s92 = sphi 0, %s78
      %s96 = sphi 0, %s96
      %s98 = sphi 0, %s96
      %s99 = sphi 0, %s98
      %s113 = sphi 0, %s99
      %s117 = sphi 0, %s117
      %s119 = sphi 0, %s117
      %s120 = sphi 0, %s119
      %s134 = sphi 0, %s120
      %s138 = sphi 0, %s138
      %s140 = sphi 0, %s138
      %s141 = sphi 0, %s140
      %s155 = sphi 0, %s141
      %s161 = sphi 0, %s163
      %s164 = sphi 0, %s161
      %s165 = sphi 0, %s164
      %s181 = sphi 0, %s165
    $region4: #{tpu_custom_call.1} parent=1 // loop_header_branch
      %18 = sbr.rel (%p16) target = $region8
    $region5: #{tpu_custom_call.1} parent=1 // loop_body
      %s20 = ssub.s32 %s15, 1
      %s21 = ssub.s32 %s15, 2
      %s22 = sadd.s32 %s15, 1
      %s23 = ssub.s32 %s15, %s22
      %p24 = scmp.eq.s32.totalorder %s23, 0
      %s26 = sadd.s32 %s25, 1
      %s27 = scalar_select %p24, %s25, %s26
      %p30 = pneg %p24
      %p31 = scmp.eq.s32.totalorder %s15, 1
      %p32 = por %p30, %p31
      %p33 = scmp.ne.s32.totalorder %s25, %s28
      %p34 = scmp.eq.s32.totalorder %s15, 0
      %p35 = por %p33, %p34
      %p36 = scmp.ne.s32.totalorder %s25, %s28
      %p37 = scmp.eq.s32.totalorder %s20, 1
      %p38 = por %p36, %p37
      %p39 = scmp.ne.s32.totalorder %s28, %s29
      %p40 = scmp.eq.s32.totalorder %s20, 0
      %p41 = por %p39, %p40
      %p42 = scmp.ne.s32.totalorder %s28, %s29
      %p43 = scmp.eq.s32.totalorder %s21, 1
      %p44 = por %p42, %p43
      %p46 = scmp.ne.s32.totalorder %s29, %s45
      %p47 = scmp.eq.s32.totalorder %s21, 0
      %p48 = por %p46, %p47
      %s49 = ssub.s32 %s15, %s22
      %p50 = scmp.eq.s32.totalorder %s49, 0
      %s52 = sadd.s32 %s51, 1
      %s53 = scalar_select %p50, %s51, %s52
      %p56 = pneg %p50
      %p57 = scmp.eq.s32.totalorder %s15, 1
      %p58 = por %p56, %p57
      %p59 = scmp.ne.s32.totalorder %s51, %s54
      %p60 = scmp.eq.s32.totalorder %s15, 0
      %p61 = por %p59, %p60
      %p62 = scmp.ne.s32.totalorder %s51, %s54
      %p63 = scmp.eq.s32.totalorder %s20, 1
      %p64 = por %p62, %p63
      %p65 = scmp.ne.s32.totalorder %s54, %s55
      %p66 = scmp.eq.s32.totalorder %s20, 0
      %p67 = por %p65, %p66
      %p68 = scmp.ne.s32.totalorder %s54, %s55
      %p69 = scmp.eq.s32.totalorder %s21, 1
      %p70 = por %p68, %p69
      %p72 = scmp.ne.s32.totalorder %s55, %s71
      %p73 = scmp.eq.s32.totalorder %s21, 0
      %p74 = por %p72, %p73
      %s76 = sadd.s32 %s75, 1
      %p79 = scmp.eq.s32.totalorder %s15, 1
      %p80 = scmp.ne.s32.totalorder %s75, %s77
      %p81 = scmp.eq.s32.totalorder %s15, 0
      %p82 = por %p80, %p81
      %p83 = scmp.ne.s32.totalorder %s75, %s77
      %p84 = scmp.eq.s32.totalorder %s20, 1
      %p85 = por %p83, %p84
      %p86 = scmp.ne.s32.totalorder %s77, %s78
      %p87 = scmp.eq.s32.totalorder %s20, 0
      %p88 = por %p86, %p87
      %p89 = scmp.ne.s32.totalorder %s77, %s78
      %p90 = scmp.eq.s32.totalorder %s21, 1
      %p91 = por %p89, %p90
      %p93 = scmp.ne.s32.totalorder %s78, %s92
      %p94 = scmp.eq.s32.totalorder %s21, 0
      %p95 = por %p93, %p94
      %s97 = sadd.s32 %s96, 1
      %p100 = scmp.eq.s32.totalorder %s15, 1
      %p101 = scmp.ne.s32.totalorder %s96, %s98
      %p102 = scmp.eq.s32.totalorder %s15, 0
      %p103 = por %p101, %p102
      %p104 = scmp.ne.s32.totalorder %s96, %s98
      %p105 = scmp.eq.s32.totalorder %s20, 1
      %p106 = por %p104, %p105
      %p107 = scmp.ne.s32.totalorder %s98, %s99
      %p108 = scmp.eq.s32.totalorder %s20, 0
      %p109 = por %p107, %p108
      %p110 = scmp.ne.s32.totalorder %s98, %s99
      %p111 = scmp.eq.s32.totalorder %s21, 1
      %p112 = por %p110, %p111
      %p114 = scmp.ne.s32.totalorder %s99, %s113
      %p115 = scmp.eq.s32.totalorder %s21, 0
      %p116 = por %p114, %p115
      %s118 = sadd.s32 %s117, 1
      %p121 = scmp.eq.s32.totalorder %s15, 1
      %p122 = scmp.ne.s32.totalorder %s117, %s119
      %p123 = scmp.eq.s32.totalorder %s15, 0
      %p124 = por %p122, %p123
      %p125 = scmp.ne.s32.totalorder %s117, %s119
      %p126 = scmp.eq.s32.totalorder %s20, 1
      %p127 = por %p125, %p126
      %p128 = scmp.ne.s32.totalorder %s119, %s120
      %p129 = scmp.eq.s32.totalorder %s20, 0
      %p130 = por %p128, %p129
      %p131 = scmp.ne.s32.totalorder %s119, %s120
      %p132 = scmp.eq.s32.totalorder %s21, 1
      %p133 = por %p131, %p132
      %p135 = scmp.ne.s32.totalorder %s120, %s134
      %p136 = scmp.eq.s32.totalorder %s21, 0
      %p137 = por %p135, %p136
      %s139 = sadd.s32 %s138, 1
      %p142 = scmp.eq.s32.totalorder %s15, 1
      %p143 = scmp.ne.s32.totalorder %s138, %s140
      %p144 = scmp.eq.s32.totalorder %s15, 0
      %p145 = por %p143, %p144
      %p146 = scmp.ne.s32.totalorder %s138, %s140
      %p147 = scmp.eq.s32.totalorder %s20, 1
      %p148 = por %p146, %p147
      %p149 = scmp.ne.s32.totalorder %s140, %s141
      %p150 = scmp.eq.s32.totalorder %s20, 0
      %p151 = por %p149, %p150
      %p152 = scmp.ne.s32.totalorder %s140, %s141
      %p153 = scmp.eq.s32.totalorder %s21, 1
      %p154 = por %p152, %p153
      %p156 = scmp.ne.s32.totalorder %s141, %s155
      %p157 = scmp.eq.s32.totalorder %s21, 0
      %p158 = por %p156, %p157
      %s159 = ssub.s32 %s15, %s22
      %p160 = scmp.eq.s32.totalorder %s159, 0
      %s162 = sadd.s32 %s161, 1
      %s163 = scalar_select %p160, %s161, %s162
      %p166 = pneg %p160
      %p167 = scmp.eq.s32.totalorder %s15, 1
      %p168 = por %p166, %p167
      %p169 = scmp.ne.s32.totalorder %s161, %s164
      %p170 = scmp.eq.s32.totalorder %s15, 0
      %p171 = por %p169, %p170
      %p172 = scmp.ne.s32.totalorder %s161, %s164
      %p173 = scmp.eq.s32.totalorder %s20, 1
      %p174 = por %p172, %p173
      %p175 = scmp.ne.s32.totalorder %s164, %s165
      %p176 = scmp.eq.s32.totalorder %s20, 0
      %p177 = por %p175, %p176
      %p178 = scmp.ne.s32.totalorder %s164, %s165
      %p179 = scmp.eq.s32.totalorder %s21, 1
      %p180 = por %p178, %p179
      %p182 = scmp.ne.s32.totalorder %s165, %s181
      %p183 = scmp.eq.s32.totalorder %s21, 0
      %p184 = por %p182, %p183
      %p185 = scmp.le.s32.totalorder 1, %s15
      %p186 = scmp.lt.s32.totalorder %s15, 3
      %p187 = pnand %p185, %p186
      %p188 = pneg %p187
      // Predicated region
      $region9: #{tpu_custom_call.1} parent=5 // pred_check
        _
      $region10: #{tpu_custom_call.1} parent=5 // pred_check_branch
        %190 = sbr.rel (%p187) target = $region12
      $region11: #{tpu_custom_call.1} parent=5 // pred_region
        %s191 = ssub.s32 %s15, 1
        // Predicated region
        $region13: #{tpu_custom_call.1} parent=11 // pred_check
          %p192 = pneg %p88
        $region14: #{tpu_custom_call.1} parent=11 // pred_check_branch
          %194 = sbr.rel (%p192) target = $region16
        $region15: #{tpu_custom_call.1} parent=11 // pred_region
          _
        $region16: #{tpu_custom_call.1} parent=11 // pred_fallthru
          _
        // Predicated region
        $region17: #{tpu_custom_call.1} parent=11 // pred_check
          %p195 = pneg %p109
        $region18: #{tpu_custom_call.1} parent=11 // pred_check_branch
          %197 = sbr.rel (%p195) target = $region20
        $region19: #{tpu_custom_call.1} parent=11 // pred_region
          _
        $region20: #{tpu_custom_call.1} parent=11 // pred_fallthru
          _
        // Predicated region
        $region21: #{tpu_custom_call.1} parent=11 // pred_check
          %p198 = pneg %p130
        $region22: #{tpu_custom_call.1} parent=11 // pred_check_branch
          %200 = sbr.rel (%p198) target = $region24
        $region23: #{tpu_custom_call.1} parent=11 // pred_region
          _
        $region24: #{tpu_custom_call.1} parent=11 // pred_fallthru
          _
        // Predicated region
        $region25: #{tpu_custom_call.1} parent=11 // pred_check
          %p201 = pneg %p151
        $region26: #{tpu_custom_call.1} parent=11 // pred_check_branch
          %203 = sbr.rel (%p201) target = $region28
        $region27: #{tpu_custom_call.1} parent=11 // pred_region
          _
        $region28: #{tpu_custom_call.1} parent=11 // pred_fallthru
          _
      $region12: #{tpu_custom_call.1} parent=5 // pred_fallthru
        _
      %p204 = scmp.lt.s32.totalorder %s15, 2
      // Predicated region
      $region29: #{tpu_custom_call.1} parent=5 // pred_check
        %p205 = pneg %p204
      $region30: #{tpu_custom_call.1} parent=5 // pred_check_branch
        %207 = sbr.rel (%p205) target = $region32
      $region31: #{tpu_custom_call.1} parent=5 // pred_region
        // Predicated region
        $region33: #{tpu_custom_call.1} parent=31 // pred_check
          %p208 = pneg %p35
        $region34: #{tpu_custom_call.1} parent=31 // pred_check_branch
          %210 = sbr.rel (%p208) target = $region36
        $region35: #{tpu_custom_call.1} parent=31 // pred_region
          %p211 = scmp.lt.s32.totalorder %s15, 1
          %s212 = scalar_select %p211, %s15, 1
          %s213 = smul.addr %s212, 4
          %s214 = scalar_lea.vmem %s0, %s213
        $region36: #{tpu_custom_call.1} parent=31 // pred_fallthru
          _
        // Predicated region
        $region37: #{tpu_custom_call.1} parent=31 // pred_check
          %p215 = pneg %p61
        $region38: #{tpu_custom_call.1} parent=31 // pred_check_branch
          %217 = sbr.rel (%p215) target = $region40
        $region39: #{tpu_custom_call.1} parent=31 // pred_region
          %p218 = scmp.lt.s32.totalorder %s15, 1
          %s219 = scalar_select %p218, %s15, 1
          %s220 = smul.addr %s219, 8
          %s221 = scalar_lea.vmem %s1, %s220
        $region40: #{tpu_custom_call.1} parent=31 // pred_fallthru
          _
      $region32: #{tpu_custom_call.1} parent=5 // pred_fallthru
        _
      %p222 = scmp.le.s32.totalorder 1, %s15
      %p223 = scmp.lt.s32.totalorder %s15, 3
      %p224 = pnand %p222, %p223
      %p225 = pneg %p224
      // Predicated region
      $region41: #{tpu_custom_call.1} parent=5 // pred_check
        _
      $region42: #{tpu_custom_call.1} parent=5 // pred_check_branch
        %227 = sbr.rel (%p224) target = $region44
      $region43: #{tpu_custom_call.1} parent=5 // pred_region
        %s228 = ssub.s32 %s15, 1
        %p229 = scmp.lt.s32.totalorder %s20, 1
        %s230 = scalar_select %p229, %s20, 1
        %s231 = smul.addr %s230, 4
        %s232 = scalar_lea.vmem %s0, %s231
        %p233 = pneg %p41
        %p234 = pneg %p38
        %p235 = scmp.lt.s32.totalorder %s20, 1
        %s236 = scalar_select %p235, %s20, 1
        %s237 = smul.addr %s236, 8
        %s238 = scalar_lea.vmem %s1, %s237
        %p239 = pneg %p67
        %p240 = pneg %p64
        %p241 = pneg %p88
        %p242 = pneg %p85
        %p243 = pneg %p109
        %p244 = pneg %p106
        %p245 = pneg %p130
        %p246 = pneg %p127
        %p247 = pneg %p151
        %p248 = pneg %p148
        %p249 = pneg %p177
        %p250 = pneg %p174
        %s251 = sand.u32 %s164, 1
        %s252 = scalar_lea.sflag [#allocation3], %s251
        %s253 = sand.u32 %s164, 1
        %s254 = smul.addr %s253, 8
        %s255 = scalar_lea.vmem [#allocation2], %s254
        %p256 = scmp.lt.s32.totalorder %s20, 1
        %s257 = scalar_select %p256, %s20, 1
        %s258 = smul.addr %s257, 4
        %s259 = scalar_lea.vmem %s0, %s258
        %p260 = scmp.lt.s32.totalorder %s20, 1
        %s261 = scalar_select %p260, %s20, 1
        %s262 = smul.addr %s261, 8
        %s263 = scalar_lea.vmem %s1, %s262
        %v264 = vld [vmem:[%s2] sm:$0xff]
        %v265 = vld [vmem:[%s3] sm:$0x1]
        %v266 = vld [vmem:[%s4] sm:$0xff]
        %v267 = vld [vmem:[%s5] sm:$0xff]
        %v268 = vlaneseq
        %v269 = vshrl.u32 %v268, 7
        %v270 = vadd.s32 %v269, 8
        %v271 = vld [vmem:[%s259] sm:$0xf]
        %vm272 = vcmask 31744
        %v274 = vsel %vm272, %v264, 0
        %vm276 = vcmask 1043456
        %v278 = vsel %vm276, %v271, 0
        %280 = vmatpush.msra.mxu0 0.0
        %281 = vmatpush.msra.mxu0 0.0
        %282 = vmatpush.msra.mxu0 0.0
        %283 = vmatpush.msra.mxu0 0.0
        %284 = vmatpush.msra.mxu0 0.0
        %285 = vmatpush.msra.mxu0 0.0
        %286 = vmatpush.msra.mxu0 0.0
        %287 = vmatpush.msra.mxu0 0.0
        %288 = vmatpush.msra.mxu0 0.0
        %289 = vmatpush.msra.mxu0 0.0
        %290 = vmatpush.msra.mxu0 0.0
        %291 = vmatpush.msra.mxu0 0.0
        %292 = vmatpush.msra.mxu0 0.0
        %293 = vmatpush.msra.mxu0 0.0
        %294 = vmatpush.msra.mxu0 0.0
        %295 = vmatpush.msra.mxu0 %v278
        %296 = vmatmul.f32.gmra.mxu0 %v274
        %v297 = vpop.f32.mrf.mxu0
        %v298 = vadd.f32 0.0, %v297
        %299 = vdwg.mxu0
        %v300 = vmax.f32 %v298, 0.0
        %vm301 = vcmask 64512
        %v303 = vsel %vm301, %v265, 0
        %305 = vmatpush.msra.mxu0 0.0
        %306 = vmatpush.msra.mxu0 0.0
        %307 = vmatpush.msra.mxu0 0.0
        %308 = vmatpush.msra.mxu0 0.0
        %309 = vmatpush.msra.mxu0 0.0
        %310 = vmatpush.msra.mxu0 0.0
        %311 = vmatpush.msra.mxu0 0.0
        %312 = vmatpush.msra.mxu0 0.0
        %313 = vmatpush.msra.mxu0 0.0
        %314 = vmatpush.msra.mxu0 0.0
        %315 = vmatpush.msra.mxu0 0.0
        %316 = vmatpush.msra.mxu0 0.0
        %317 = vmatpush.msra.mxu0 0.0
        %318 = vmatpush.msra.mxu0 0.0
        %319 = vmatpush.msra.mxu0 0.0
        %320 = vmatpush.msra.mxu0 %v300
        %321 = vmatmul.f32.gmra.mxu0 %v303
        %v322 = vpop.f32.mrf.mxu0
        %v323 = vadd.f32 0.0, %v322
        %324 = vdwg.mxu0
        %325 = vxpose.xlu0.b32.start [1/16] %v300, 128
        %326 = vxpose.xlu0.b32.cont [2/16] 0.0, 128
        %327 = vxpose.xlu0.b32.cont [3/16] 0.0, 128
        %328 = vxpose.xlu0.b32.cont [4/16] 0.0, 128
        %329 = vxpose.xlu0.b32.cont [5/16] 0.0, 128
        %330 = vxpose.xlu0.b32.cont [6/16] 0.0, 128
        %331 = vxpose.xlu0.b32.cont [7/16] 0.0, 128
        %332 = vxpose.xlu0.b32.cont [8/16] 0.0, 128
        %333 = vxpose.xlu0.b32.cont [9/16] 0.0, 128
        %334 = vxpose.xlu0.b32.cont [10/16] 0.0, 128
        %335 = vxpose.xlu0.b32.cont [11/16] 0.0, 128
        %336 = vxpose.xlu0.b32.cont [12/16] 0.0, 128
        %337 = vxpose.xlu0.b32.cont [13/16] 0.0, 128
        %338 = vxpose.xlu0.b32.cont [14/16] 0.0, 128
        %339 = vxpose.xlu0.b32.cont [15/16] 0.0, 128
        %340 = vxpose.xlu0.b32.end [16/16] 0.0, 128
        %v341 = vpop.trf.xlu0
        %v342 = vpop.trf.xlu0
        %v343 = vpop.trf.xlu0
        %v344 = vpop.trf.xlu0
        %v345 = vpop.trf.xlu0
        %v346 = vpop.trf.xlu0
        %v347 = vpop.trf.xlu0
        %v348 = vpop.trf.xlu0
        %v349 = vpop.trf.xlu0
        %v350 = vpop.trf.xlu0
        %v351 = vpop.trf.xlu0
        %v352 = vpop.trf.xlu0
        %v353 = vpop.trf.xlu0
        %v354 = vpop.trf.xlu0
        %v355 = vpop.trf.xlu0
        %v356 = vpop.trf.xlu0
        %v358 = vsel %vm301, %v341, 0
        %v361 = vsel %vm301, %v342, 0
        %363 = vmatpush.msra.mxu0 0.0
        %364 = vmatpush.msra.mxu0 0.0
        %365 = vmatpush.msra.mxu0 0.0
        %366 = vmatpush.msra.mxu0 0.0
        %367 = vmatpush.msra.mxu0 0.0
        %368 = vmatpush.msra.mxu0 0.0
        %369 = vmatpush.msra.mxu0 0.0
        %370 = vmatpush.msra.mxu0 0.0
        %371 = vmatpush.msra.mxu0 0.0
        %372 = vmatpush.msra.mxu0 0.0
        %373 = vmatpush.msra.mxu0 0.0
        %374 = vmatpush.msra.mxu0 0.0
        %375 = vmatpush.msra.mxu0 0.0
        %376 = vmatpush.msra.mxu0 0.0
        %377 = vmatpush.msra.mxu0 0.0
        %378 = vmatpush.msra.mxu0 %v266
        %379 = vmatmul.f32.gmra.mxu0 %v358
        %v380 = vpop.f32.mrf.mxu0
        %v381 = vadd.f32 0.0, %v380
        %382 = vmatmul.f32.gmra.mxu0 %v361
        %v383 = vpop.f32.mrf.mxu0
        %v384 = vadd.f32 0.0, %v383
        %385 = vdwg.mxu0
        %v386 = vld [vmem:[%s263] sm:$0x1f]
        %v387 = vperm.slane %v386, 0
        %vm388 = vcmp.eq.s32.totalorder %v269, %v387
        %vm389 = vcmp.eq.s32.totalorder %v270, %v387
        %v390 = vsel %vm388, 1, 0
        %v391 = vsel %vm389, 1, 0
        %v392 = vcvt.s32.f32 %v390
        %v393 = vcvt.s32.f32 %v391
        %v394 = vadd.f32 %v392, 0.0
        %v395 = vadd.f32 %v393, 0.0
        %v396 = vperm.slane %v386, 1
        %vm397 = vcmp.eq.s32.totalorder %v269, %v396
        %vm398 = vcmp.eq.s32.totalorder %v270, %v396
        %v399 = vsel %vm397, 1, 0
        %v400 = vsel %vm398, 1, 0
        %v401 = vcvt.s32.f32 %v399
        %v402 = vcvt.s32.f32 %v400
        %v403 = vadd.f32 %v394, %v401
        %v404 = vadd.f32 %v395, %v402
        %v405 = vperm.slane %v386, 2
        %vm406 = vcmp.eq.s32.totalorder %v269, %v405
        %vm407 = vcmp.eq.s32.totalorder %v270, %v405
        %v408 = vsel %vm406, 1, 0
        %v409 = vsel %vm407, 1, 0
        %v410 = vcvt.s32.f32 %v408
        %v411 = vcvt.s32.f32 %v409
        %v412 = vadd.f32 %v403, %v410
        %v413 = vadd.f32 %v404, %v411
        %v414 = vperm.slane %v386, 3
        %vm415 = vcmp.eq.s32.totalorder %v269, %v414
        %vm416 = vcmp.eq.s32.totalorder %v270, %v414
        %v417 = vsel %vm415, 1, 0
        %v418 = vsel %vm416, 1, 0
        %v419 = vcvt.s32.f32 %v417
        %v420 = vcvt.s32.f32 %v418
        %v421 = vadd.f32 %v412, %v419
        %v422 = vadd.f32 %v413, %v420
        %v423 = vperm.slane %v386, 4
        %vm424 = vcmp.eq.s32.totalorder %v269, %v423
        %vm425 = vcmp.eq.s32.totalorder %v270, %v423
        %v426 = vsel %vm424, 1, 0
        %v427 = vsel %vm425, 1, 0
        %v428 = vcvt.s32.f32 %v426
        %v429 = vcvt.s32.f32 %v427
        %v430 = vadd.f32 %v421, %v428
        %v431 = vadd.f32 %v422, %v429
        %433 = vset.pattern.permute.xlu0 0
        %434 = vperm.xlu0 %433, %v381
        %v435 = vpop.permute.xlu0 %434
        %438 = vset.pattern.permute.xlu0 0
        %439 = vperm.xlu0 %438, %v384
        %v440 = vpop.permute.xlu0 %439
        %v442 = vperm.slane %v323, 0
        %v443 = vadd.f32 %v435, %v442
        %v444 = vadd.f32 %v440, %v442
        %vm445 = vcmp.ge.f32.partialorder %v443, 0.0
        %vm446 = vcmp.ge.f32.partialorder %v444, 0.0
        %v447 = vmul.f32 %v443, 0.2
        %v448 = vmul.f32 %v444, 0.2
        %v449 = vsel %vm445, %v443, %v447
        %v450 = vsel %vm446, %v444, %v448
        %vm451 = vcmp.gt.f32.partialorder %v430, 0.0
        %vm452 = vcmp.gt.f32.partialorder %v431, 0.0
        %v453 = vsel %vm451, %v449, -inf
        %v454 = vsel %vm452, %v450, -inf
        %vm455 = vcmask 130048
        %v456 = vsel %vm455, %v453, -inf
        %v457 = vsel %vm455, %v454, -inf
        %v458 = vmax.f32 %v456, %v457
        %v459 = vrot.slane %v458, 4
        %v460 = vmax.f32 %v458, %v459
        %v461 = vrot.slane %v460, 2
        %v462 = vmax.f32 %v460, %v461
        %v463 = vrot.slane %v462, 1
        %v464 = vmax.f32 %v462, %v463
        %v465 = vsub.f32 %v453, %v464
        %v466 = vsub.f32 %v454, %v464
        %v467 = vmul.f32 %v465, 1.442695
        %v468 = vpow.pop %v467
        %v469 = vmul.f32 %v466, 1.442695
        %v470 = vpow.pop %v469
        %v471 = vmul.f32 %v430, %v468
        %v472 = vmul.f32 %v431, %v470
        %v473 = vsel %vm455, %v471, 0.0
        %v474 = vsel %vm455, %v472, 0.0
        %v475 = vadd.f32 %v473, %v474
        %v476 = vrot.slane %v475, 4
        %v477 = vadd.f32 %v475, %v476
        %v478 = vrot.slane %v477, 2
        %v479 = vadd.f32 %v477, %v478
        %v480 = vrot.slane %v479, 1
        %v481 = vadd.f32 %v479, %v480
        %v482 = vrcp.pop %v481
        %v483 = vmul.f32 %v471, %v482
        %v484 = vmul.f32 %v472, %v482
        %486 = vset.pattern.permute.xlu0 0
        %487 = vperm.xlu0 %486, %v267
        %v488 = vpop.permute.xlu0 %487
        %v491 = vsel %vm455, %v300, 0
        %493 = vmatpush.msra.mxu0 0.0
        %494 = vmatpush.msra.mxu0 0.0
        %495 = vmatpush.msra.mxu0 0.0
        %496 = vmatpush.msra.mxu0 0.0
        %497 = vmatpush.msra.mxu0 0.0
        %498 = vmatpush.msra.mxu0 0.0
        %499 = vmatpush.msra.mxu0 0.0
        %500 = vmatpush.msra.mxu0 0.0
        %501 = vmatpush.msra.mxu0 0.0
        %502 = vmatpush.msra.mxu0 0.0
        %503 = vmatpush.msra.mxu0 0.0
        %504 = vmatpush.msra.mxu0 0.0
        %505 = vmatpush.msra.mxu0 0.0
        %506 = vmatpush.msra.mxu0 0.0
        %507 = vmatpush.msra.mxu0 %v484
        %508 = vmatpush.msra.mxu0 %v483
        %509 = vmatmul.f32.gmra.mxu0 %v491
        %v510 = vpop.f32.mrf.mxu0
        %v511 = vadd.f32 %v488, %v510
        %512 = vdwg.mxu0
        %513 = vst.msk [vmem:[%s255] sm:$0xff] %vm455, %v511
        %s514 = sand.u32 %s164, 1
        %s515 = scalar_lea.sflag [#allocation3], %s514
        %s516 = sand.u32 %s164, 1
        %s517 = smul.addr %s516, 8
        %s518 = scalar_lea.vmem [#allocation2], %s517
        // Predicated region
        $region45: #{tpu_custom_call.1} parent=43 // pred_check
          %p519 = pneg %p174
        $region46: #{tpu_custom_call.1} parent=43 // pred_check_branch
          %521 = sbr.rel (%p519) target = $region48
        $region47: #{tpu_custom_call.1} parent=43 // pred_region
          %523 = vsyncadd %s515, 0
          %s524 = smul.addr %s20, 8
          %s525 = scalar_lea.hbm %s6, %s524
          %s527 = sshll.u32 %s518, 4
          %s528 = int_to_ptr.vmem [resolvable:$true] %s527
          %s529 = sshll.u32 %s525, 4
          %s530 = int_to_ptr.hbm [resolvable:$true] %s529
          %532 = dma.vmem_to_hbm [thread:$0]  %s528, 128, %s530, %s515
        $region48: #{tpu_custom_call.1} parent=43 // pred_fallthru
          _
      $region44: #{tpu_custom_call.1} parent=5 // pred_fallthru
        _
      %p533 = scmp.le.s32.totalorder 2, %s15
      // Predicated region
      $region49: #{tpu_custom_call.1} parent=5 // pred_check
        %p534 = pneg %p533
      $region50: #{tpu_custom_call.1} parent=5 // pred_check_branch
        %536 = sbr.rel (%p534) target = $region52
      $region51: #{tpu_custom_call.1} parent=5 // pred_region
        %s537 = ssub.s32 %s15, 2
        // Predicated region
        $region53: #{tpu_custom_call.1} parent=51 // pred_check
          %p538 = pneg %p180
        $region54: #{tpu_custom_call.1} parent=51 // pred_check_branch
          %540 = sbr.rel (%p538) target = $region56
        $region55: #{tpu_custom_call.1} parent=51 // pred_region
          %s541 = sand.u32 %s165, 1
          %s542 = scalar_lea.sflag [#allocation3], %s541
          %s543 = sand.u32 %s165, 1
          %s544 = smul.addr %s543, 8
          %s545 = scalar_lea.vmem [#allocation2], %s544
          %547 = dma.done %s542, 128
        $region56: #{tpu_custom_call.1} parent=51 // pred_fallthru
          _
      $region52: #{tpu_custom_call.1} parent=5 // pred_fallthru
        _
    $region6: #{tpu_custom_call.1} parent=1 // loop_footer
      %s19 = sadd.s32 1, %s15
    $region7: #{tpu_custom_call.1} parent=1 // loop_footer_branch
      %14 = sbr.rel target = $region3
    $region8: #{tpu_custom_call.1} parent=1 // loop_exit
      _
    %548 = vsyncpa [#allocation3], 1
    %s549 = scalar_lea.sflag [#allocation3], 1
    %550 = vsyncpa %s549, 1

</llo_original>
